<compile_context>
chip_gen: v7x
topology: tpu7x:2x2x1
jax: 0.10.0
libtpu: 0.0.40
codegen_flags: <defaults>
</compile_context>

<pallas_src>
import functools

import jax
import jax.numpy as jnp
from jax import lax
from jax.experimental import pallas as pl
from jax.experimental.pallas import tpu as pltpu


# ----------------------------------------------------------------------------
# Kernel 1: batched input projection  Gi = X_emb @ W_ih^T + b_ih   (parallel)
# ----------------------------------------------------------------------------
def _input_proj_kernel(x_ref, wih_t_ref, bih_ref, gi_ref):
    """x_ref: (TM, H) bf16, wih_t_ref: (H, 3H) bf16, bih_ref: (1, 3H) f32,
    gi_ref: (TM, 3H) f32."""
    gi_ref[...] = (
        jnp.dot(x_ref[...], wih_t_ref[...], preferred_element_type=jnp.float32)
        + bih_ref[...]
    )


# ----------------------------------------------------------------------------
# Kernel 2: serial GRU recurrence over timestep chunks of size T
# ----------------------------------------------------------------------------
def _gru_recurrent_kernel(gi_ref, h0_ref, whh_t_ref, bhh_ref, out_ref, h_scratch,
                          *, T, L, H):
    """One grid step = T timesteps of the GRU.

    gi_ref    : VMEM (T, 3H) f32   precomputed input projection for this chunk
    h0_ref    : VMEM (1, H)  f32   initial hidden state (read only at chunk 0)
    whh_t_ref : VMEM (H, 3H) bf16  W_hh^T (gate order r, z, n) -- VMEM resident
    bhh_ref   : VMEM (1, 3H) f32
    out_ref   : VMEM (T, H)  f32   hidden state for each timestep of the chunk
    h_scratch : VMEM (1, H)  f32   recurrent hidden state carried across chunks
    """
    c = pl.program_id(0)

    @pl.when(c == 0)
    def _():
        h_scratch[...] = h0_ref[...]

    whh_t = whh_t_ref[...]   # (H, 3H) bf16, stays resident across chunks
    bhh = bhh_ref[...]       # (1, 3H) f32

    def step(i, carry):
        del carry
        t = c * T + i
        h_prev = h_scratch[...]                                      # (1, H) f32
        # recurrent projection for all three gates at once: (1,H) @ (H,3H)
        gh = jnp.dot(h_prev.astype(whh_t.dtype), whh_t,
                     preferred_element_type=jnp.float32) + bhh        # (1, 3H)
        gi = gi_ref[pl.ds(i, 1), :]                                   # (1, 3H)

        r = jax.nn.sigmoid(gi[:, 0:H] + gh[:, 0:H])
        z = jax.nn.sigmoid(gi[:, H:2 * H] + gh[:, H:2 * H])
        n = jnp.tanh(gi[:, 2 * H:3 * H] + r * gh[:, 2 * H:3 * H])
        h_new = (1.0 - z) * n + z * h_prev

        # Padded tail steps (t >= L) must not advance the recurrent state.
        h_new = jnp.where(t < L, h_new, h_prev)
        h_scratch[...] = h_new
        out_ref[pl.ds(i, 1), :] = h_new
        return 0

    lax.fori_loop(0, T, step, 0, unroll=True)


# ----------------------------------------------------------------------------
# Wrappers
# ----------------------------------------------------------------------------
def encoder_forward_seq(tokens, hidden, params, *, chunk=8):
    """Runs the encoder GRU over a full token sequence.

    tokens : (L,) int32 token ids
    hidden : (1, 1, H) float32 initial hidden state (Encoder.initHidden())
    returns (outputs, hidden) with shapes (L, 1, H) and (1, 1, H)
    """
    emb = params["embedding_bf16"]     # (V, H)  bf16
    wih_t = params["w_ih_t_bf16"]      # (H, 3H) bf16
    whh_t = params["w_hh_t_bf16"]      # (H, 3H) bf16
    bih = params["b_ih2"]              # (1, 3H) f32
    bhh = params["b_hh2"]              # (1, 3H) f32

    V, H = emb.shape
    L = int(tokens.shape[0])
    T = int(chunk)
    Lp = ((L + T - 1) // T) * T        # pad timesteps to a multiple of the chunk size

    # clamp token ids (no bounds checks on VMEM reads) and pad with <PAD> = 0
    toks = jnp.clip(jnp.asarray(tokens, dtype=jnp.int32), 0, V - 1)
    toks_p = jnp.pad(toks, (0, Lp - L))
    h0 = hidden.reshape(1, H).astype(jnp.float32)

    # ---- parallel part: embedding gather (XLA) + batched input projection (Pallas)
    x_emb = jnp.take(emb, toks_p, axis=0)                       # (Lp, H) bf16

    gi_all = pl.pallas_call(
        _input_proj_kernel,
        out_shape=jax.ShapeDtypeStruct((Lp, 3 * H), jnp.float32),
        grid=(1,),                                              # Lp is tiny (max_length+2)
        in_specs=[
            pl.BlockSpec((Lp, H), lambda i: (0, 0)),
            pl.BlockSpec((H, 3 * H), lambda i: (0, 0)),
            pl.BlockSpec((1, 3 * H), lambda i: (0, 0)),
        ],
        out_specs=pl.BlockSpec((Lp, 3 * H), lambda i: (0, 0)),
        compiler_params=pltpu.CompilerParams(
            dimension_semantics=("parallel",),
        ),
    )(x_emb, wih_t, bih)

    # ---- serial part: GRU recurrence over chunks of T timesteps
    grid_spec = pltpu.PrefetchScalarGridSpec(
        num_scalar_prefetch=0,
        grid=(Lp // T,),
        in_specs=[
            pl.BlockSpec((T, 3 * H), lambda c: (c, 0)),          # Gi chunk
            pl.BlockSpec((1, H), lambda c: (0, 0)),              # h0
            pl.BlockSpec((H, 3 * H), lambda c: (0, 0)),          # W_hh^T (resident)
            pl.BlockSpec((1, 3 * H), lambda c: (0, 0)),          # b_hh   (resident)
        ],
        out_specs=pl.BlockSpec((T, H), lambda c: (c, 0)),
        scratch_shapes=[pltpu.VMEM((1, H), jnp.float32)],
    )

    outputs_2d = pl.pallas_call(
        functools.partial(_gru_recurrent_kernel, T=T, L=L, H=H),
        out_shape=jax.ShapeDtypeStruct((Lp, H), jnp.float32),
        grid_spec=grid_spec,
        compiler_params=pltpu.CompilerParams(
            # recurrence over timestep chunks -> must run sequentially
            dimension_semantics=("arbitrary",),
            vmem_limit_bytes=32 * 1024 * 1024,
        ),
    )(gi_all, h0, whh_t, bhh)

    outputs = outputs_2d[:L].reshape(L, 1, H)
    h_final = outputs_2d[L - 1].reshape(1, 1, H)   # final hidden = last valid step
    return outputs, h_final


def encoder_forward(token, hidden, params):
    """Mirrors Encoder.forward(input, hidden): a single token step (L = 1)."""
    H = params["embedding_bf16"].shape[-1]
    tok = jnp.asarray(token, dtype=jnp.int32).reshape((1,))
    outputs, h_new = encoder_forward_seq(tok, hidden, params)
    return outputs.reshape(1, 1, H), h_new


# ----------------------------------------------------------------------------
# Parameter init / layout prep
# ----------------------------------------------------------------------------
def init_encoder_params(key, input_size, hidden_size):
    """Deterministic parameter init matching the shapes of nn.Embedding + nn.GRU."""
    k_emb, k_wih, k_whh, k_bih, k_bhh = jax.random.split(key, 5)
    H = hidden_size
    bound = 1.0 / jnp.sqrt(H)
    return {
        # nn.Embedding(input_size, hidden_size): N(0,1)
        "embedding": jax.random.normal(k_emb, (input_size, H), dtype=jnp.float32),
        # nn.GRU(H, H): weight_ih_l0 (3H, H), weight_hh_l0 (3H, H), biases (3H,)
        "w_ih": jax.random.uniform(k_wih, (3 * H, H), jnp.float32, -bound, bound),
        "w_hh": jax.random.uniform(k_whh, (3 * H, H), jnp.float32, -bound, bound),
        "b_ih": jax.random.uniform(k_bih, (3 * H,), jnp.float32, -bound, bound),
        "b_hh": jax.random.uniform(k_bhh, (3 * H,), jnp.float32, -bound, bound),
    }


def prepare_params(params):
    """ONE-TIME layout prep: transpose weights to (H, 3H) and cast weights/embedding
    to bf16 (MXU native, halves VMEM residency + weight streaming); biases stay f32."""
    V, H = params["embedding"].shape
    return {
        "embedding_bf16": params["embedding"].astype(jnp.bfloat16),
        "w_ih_t_bf16": jnp.asarray(params["w_ih"].T, dtype=jnp.bfloat16),
        "w_hh_t_bf16": jnp.asarray(params["w_hh"].T, dtype=jnp.bfloat16),
        "b_ih2": params["b_ih"].reshape(1, 3 * H).astype(jnp.float32),
        "b_hh2": params["b_hh"].reshape(1, 3 * H).astype(jnp.float32),
    }


# ----------------------------------------------------------------------------
# Pure-JAX reference (mirrors the kernel's bf16 weight quantization)
# ----------------------------------------------------------------------------
def _reference_forward_seq(tokens, hidden, raw_params):
    H = raw_params["embedding"].shape[1]
    emb = raw_params["embedding"].astype(jnp.bfloat16)
    wih_t = raw_params["w_ih"].T.astype(jnp.bfloat16)
    whh_t = raw_params["w_hh"].T.astype(jnp.bfloat16)
    bih = raw_params["b_ih"].reshape(1, 3 * H).astype(jnp.float32)
    bhh = raw_params["b_hh"].reshape(1, 3 * H).astype(jnp.float32)

    h = hidden.reshape(1, H).astype(jnp.float32)
    outs = []
    for t in [int(t) for t in tokens]:
        x = emb[t].reshape(1, H)
        gi = jnp.dot(x, wih_t, preferred_element_type=jnp.float32) + bih
        gh = jnp.dot(h.astype(jnp.bfloat16), whh_t,
                     preferred_element_type=jnp.float32) + bhh
        r = jax.nn.sigmoid(gi[:, :H] + gh[:, :H])
        z = jax.nn.sigmoid(gi[:, H:2 * H] + gh[:, H:2 * H])
        n = jnp.tanh(gi[:, 2 * H:] + r * gh[:, 2 * H:])
        h = (1.0 - z) * n + z * h
        outs.append(h)
    return jnp.stack(outs, axis=0), h.reshape(1, 1, H)


if __name__ == "__main__":
    # Small shapes consistent with the module (production: hidden_size=256,
    # vocab = English vocab size, sequences of length <= max_length + 2 = 14).
    # H kept a multiple of 128 for lane-dense layout; SEQ=12 exercises the
    # padded-tail masking (Lp = 16, two chunks).
    VOCAB = 64
    HIDDEN = 128
    SEQ = 12

    key = jax.random.PRNGKey(0)
    k_params, k_tok = jax.random.split(key, 2)

    raw_params = init_encoder_params(k_params, VOCAB, HIDDEN)
    params = prepare_params(raw_params)   # one-time transpose/cast, reused per call

    tokens = jax.random.randint(k_tok, (SEQ,), 0, VOCAB, dtype=jnp.int32)
    hidden = jnp.zeros((1, 1, HIDDEN), dtype=jnp.float32)   # Encoder.initHidden()

    # full-sequence encoder: one parallel projection kernel + one sequential GRU kernel
    outputs, new_hidden = encoder_forward_seq(tokens, hidden, params)
    outputs = jax.block_until_ready(outputs)
    new_hidden = jax.block_until_ready(new_hidden)

    ref_out, ref_hid = _reference_forward_seq(tokens, hidden, raw_params)
    assert outputs.shape == (SEQ, 1, HIDDEN) and new_hidden.shape == (1, 1, HIDDEN)
    assert jnp.allclose(outputs, ref_out, atol=1e-2), "output mismatch vs reference"
    assert jnp.allclose(new_hidden, ref_hid, atol=1e-2), "hidden mismatch vs reference"

    # also exercise the single-step Encoder.forward(input, hidden) wrapper
    out1, hid1 = encoder_forward(tokens[0], hidden, params)
    out1 = jax.block_until_ready(out1)
    assert out1.shape == (1, 1, HIDDEN) and hid1.shape == (1, 1, HIDDEN)
    assert jnp.allclose(out1, ref_out[0].reshape(1, 1, HIDDEN), atol=1e-2)

    print("KERNEL_OK")
</pallas_src>

<mosaic_0001>
module attributes {stable_mosaic.version = 11 : i64} {
  func.func @_input_proj_kernel(%arg0: i32, %arg1: memref<16x128xbf16, #tpu.memory_space<vmem>>, %arg2: memref<128x384xbf16, #tpu.memory_space<vmem>>, %arg3: memref<1x384xf32, #tpu.memory_space<vmem>>, %arg4: memref<16x384xf32, #tpu.memory_space<vmem>>) attributes {dimension_semantics = [#tpu.dimension_semantics<parallel>], iteration_bounds = array<i64: 1>, scalar_prefetch = 0 : i64, scratch_operands = 0 : i64, tpu.core_type = #tpu.core_type<tc>, window_params = [{pipeline_mode = #tpu.pipeline_mode<synchronous>, transform_indices = @transform_0, window_bounds = array<i64: 16, 128>}, {pipeline_mode = #tpu.pipeline_mode<synchronous>, transform_indices = @transform_1, window_bounds = array<i64: 128, 384>}, {pipeline_mode = #tpu.pipeline_mode<synchronous>, transform_indices = @transform_2, window_bounds = array<i64: 1, 384>}, {pipeline_mode = #tpu.pipeline_mode<synchronous>, transform_indices = @transform_3, window_bounds = array<i64: 16, 384>}]} {
    %c0 = arith.constant 0 : index
    %c0_0 = arith.constant 0 : index
    %0 = vector.load %arg1[%c0, %c0_0] : memref<16x128xbf16, #tpu.memory_space<vmem>>, vector<16x128xbf16>
    %c0_1 = arith.constant 0 : index
    %c0_2 = arith.constant 0 : index
    %1 = vector.load %arg2[%c0_1, %c0_2] : memref<128x384xbf16, #tpu.memory_space<vmem>>, vector<128x384xbf16>
    %cst = arith.constant dense<0.000000e+00> : vector<16x384xf32>
    %2 = tpu.matmul %0, %1, %cst {dimension_numbers = #tpu.dot_dimension_numbers<[1], [0], [0], [1], [0, 0, 1, 1], [], []>} : vector<16x128xbf16>, vector<128x384xbf16>, vector<16x384xf32> -> vector<16x384xf32>
    %c0_3 = arith.constant 0 : index
    %c0_4 = arith.constant 0 : index
    %3 = vector.load %arg3[%c0_3, %c0_4] : memref<1x384xf32, #tpu.memory_space<vmem>>, vector<1x384xf32>
    %4 = vector.broadcast %3 : vector<1x384xf32> to vector<16x384xf32>
    %5 = arith.addf %2, %4 : vector<16x384xf32>
    %c0_5 = arith.constant 0 : index
    %c0_6 = arith.constant 0 : index
    %6 = vector.load %arg4[%c0_5, %c0_6] : memref<16x384xf32, #tpu.memory_space<vmem>>, vector<16x384xf32>
    tpu.vector_store %arg4[%c0_5, %c0_6], %5 {strides = array<i32>} : memref<16x384xf32, #tpu.memory_space<vmem>>, vector<16x384xf32>,
    return
  }
  func.func @transform_0(%arg0: i32) -> (i32, i32) {
    %c0_i32 = arith.constant 0 : i32
    %c0_i32_0 = arith.constant 0 : i32
    %c0_i32_1 = arith.constant 0 : i32
    return %c0_i32, %c0_i32_0 : i32, i32
  }
  func.func @transform_1(%arg0: i32) -> (i32, i32) {
    %c0_i32 = arith.constant 0 : i32
    %c0_i32_0 = arith.constant 0 : i32
    %c0_i32_1 = arith.constant 0 : i32
    return %c0_i32, %c0_i32_0 : i32, i32
  }
  func.func @transform_2(%arg0: i32) -> (i32, i32) {
    %c0_i32 = arith.constant 0 : i32
    %c0_i32_0 = arith.constant 0 : i32
    %c0_i32_1 = arith.constant 0 : i32
    return %c0_i32, %c0_i32_0 : i32, i32
  }
  func.func @transform_3(%arg0: i32) -> (i32, i32) {
    %c0_i32 = arith.constant 0 : i32
    %c0_i32_0 = arith.constant 0 : i32
    %c0_i32_1 = arith.constant 0 : i32
    return %c0_i32, %c0_i32_0 : i32, i32
  }
}

</mosaic_0001>

<llo_original>
// kernel: tpu_custom_call.1
$region0: #{tpu_custom_call.1}
  #allocation0 [shape = 'u32[]', space=smem, size = 0x4, offset = 0x4, fixed_abs, tag = 'smem constant byte address 0x4 - core index']
  #allocation1 [shape = 'u32[144,128]{1,0:T(1,128)}', space=vmem, size = 0x12000, scoped, tag = 'internal scratch']
  %s0 = inlined_call_operand.hbm [shape: bf16[16,128], index: 0, kind: input, shape index: {}]
  %s1 = inlined_call_operand.hbm [shape: bf16[128,384], index: 1, kind: input, shape index: {}]
  %s2 = inlined_call_operand.vmem [shape: f32[1,384], index: 2, kind: input, shape index: {}]
  %s3 = inlined_call_operand.hbm [shape: f32[16,384], index: 3, kind: output, shape index: {}]
  %s4 = sld [smem:[#allocation0]]
  $region30: #{tpu_custom_call.1} parent=0
    _
  %s6 = ssub.s32 1, %s4
  %s7 = scalar_select 0, %s6, %s4
  $region1: #{tpu_custom_call.1} parent=0
    #allocation2 [shape = 'u8[4096]{0}', space=vmem, size = 0x1000, scoped, tag = 'input window, operand 0, single buffered']
    #allocation3 [shape = 's32[1]{0}', space=sflag, size = 0x4, scoped, tag = 'scoped memory for tpu_custom_call.1']
    #allocation4 [shape = 's32[1]{0}', space=sflag, size = 0x4, scoped, tag = 'scoped memory for tpu_custom_call.1']
    #allocation5 [shape = 'u8[98304]{0}', space=vmem, size = 0x18000, scoped, tag = 'input window, operand 1, single buffered']
    #allocation6 [shape = 's32[1]{0}', space=sflag, size = 0x4, scoped, tag = 'scoped memory for tpu_custom_call.1']
    #allocation7 [shape = 'u8[24576]{0}', space=vmem, size = 0x6000, scoped, tag = 'output window, operand 0, single buffered']
    %8 = vsyncpa [#allocation3], 0
    %9 = vsyncpa [#allocation6], 0
    %10 = vsyncpa [#allocation4], 0
    // Predicated region
    $region2: #{tpu_custom_call.1} parent=1 // pred_check
      _
    $region3: #{tpu_custom_call.1} parent=1 // pred_check_branch
      %12 = sbr.rel (0) target = $region5
    $region4: #{tpu_custom_call.1} parent=1 // pred_region
      %s14 = ssub.s32 128, 128
      %15 = vsyncadd [#allocation3], %s14
      %s16 = sshll.u32 [#allocation2], 4
      %s17 = int_to_ptr.vmem [resolvable:$true] %s16
      %22 = dma.hbm_to_vmem [thread:$0]  %s0, 128, %s17, [#allocation3], 64, 64, 4
    $region5: #{tpu_custom_call.1} parent=1 // pred_fallthru
      _
    // Predicated region
    $region6: #{tpu_custom_call.1} parent=1 // pred_check
      _
    $region7: #{tpu_custom_call.1} parent=1 // pred_check_branch
      %24 = sbr.rel (0) target = $region9
    $region8: #{tpu_custom_call.1} parent=1 // pred_region
      %s26 = ssub.s32 3072, 3072
      %27 = vsyncadd [#allocation6], %s26
      %s28 = sshll.u32 [#allocation5], 4
      %s29 = int_to_ptr.vmem [resolvable:$true] %s28
      %34 = dma.hbm_to_vmem [thread:$0]  %s1, 3072, %s29, [#allocation6], 192, 192, 12
    $region9: #{tpu_custom_call.1} parent=1 // pred_fallthru
      _
    // Predicated region
    $region10: #{tpu_custom_call.1} parent=1 // pred_check
      _
    $region11: #{tpu_custom_call.1} parent=1 // pred_check_branch
      %36 = sbr.rel (0) target = $region13
    $region12: #{tpu_custom_call.1} parent=1 // pred_region
      _
    $region13: #{tpu_custom_call.1} parent=1 // pred_fallthru
      _
    // Predicated region
    $region14: #{tpu_custom_call.1} parent=1 // pred_check
      _
    $region15: #{tpu_custom_call.1} parent=1 // pred_check_branch
      %38 = sbr.rel (0) target = $region17
    $region16: #{tpu_custom_call.1} parent=1 // pred_region
      %39 = dma.done [#allocation3], 128
    $region17: #{tpu_custom_call.1} parent=1 // pred_fallthru
      _
    // Predicated region
    $region18: #{tpu_custom_call.1} parent=1 // pred_check
      _
    $region19: #{tpu_custom_call.1} parent=1 // pred_check_branch
      %41 = sbr.rel (0) target = $region21
    $region20: #{tpu_custom_call.1} parent=1 // pred_region
      %42 = dma.done [#allocation6], 3072
    $region21: #{tpu_custom_call.1} parent=1 // pred_fallthru
      _
    %v44 = vld [vmem:[#allocation2] sm:$0xf]
    %v45 = vld [vmem:[#allocation2 + $0x4] sm:$0xf]
    %v46 = vld [vmem:[#allocation5] sm:$0xff]
    %v47 = vld [vmem:[#allocation5 + $0x8] sm:$0xf]
    %v48 = vld [vmem:[#allocation5 + $0xc] sm:$0xff]
    %v49 = vld [vmem:[#allocation5 + $0x14] sm:$0xf]
    %v50 = vld [vmem:[#allocation5 + $0x18] sm:$0xff]
    %v51 = vld [vmem:[#allocation5 + $0x20] sm:$0xf]
    %v52 = vld [vmem:[#allocation5 + $0x24] sm:$0xff]
    %v53 = vld [vmem:[#allocation5 + $0x2c] sm:$0xf]
    %v54 = vld [vmem:[#allocation5 + $0x30] sm:$0xff]
    %v55 = vld [vmem:[#allocation5 + $0x38] sm:$0xf]
    %v56 = vld [vmem:[#allocation5 + $0x3c] sm:$0xff]
    %v57 = vld [vmem:[#allocation5 + $0x44] sm:$0xf]
    %v58 = vld [vmem:[#allocation5 + $0x48] sm:$0xff]
    %v59 = vld [vmem:[#allocation5 + $0x50] sm:$0xf]
    %v60 = vld [vmem:[#allocation5 + $0x54] sm:$0xff]
    %v61 = vld [vmem:[#allocation5 + $0x5c] sm:$0xf]
    %v62 = vld [vmem:[#allocation5 + $0x60] sm:$0xff]
    %v63 = vld [vmem:[#allocation5 + $0x68] sm:$0xf]
    %v64 = vld [vmem:[#allocation5 + $0x6c] sm:$0xff]
    %v65 = vld [vmem:[#allocation5 + $0x74] sm:$0xf]
    %v66 = vld [vmem:[#allocation5 + $0x78] sm:$0xff]
    %v67 = vld [vmem:[#allocation5 + $0x80] sm:$0xf]
    %v68 = vld [vmem:[#allocation5 + $0x84] sm:$0xff]
    %v69 = vld [vmem:[#allocation5 + $0x8c] sm:$0xf]
    %v70 = vld [vmem:[#allocation5 + $0x90] sm:$0xff]
    %v71 = vld [vmem:[#allocation5 + $0x98] sm:$0xf]
    %v72 = vld [vmem:[#allocation5 + $0x9c] sm:$0xff]
    %v73 = vld [vmem:[#allocation5 + $0xa4] sm:$0xf]
    %v74 = vld [vmem:[#allocation5 + $0xa8] sm:$0xff]
    %v75 = vld [vmem:[#allocation5 + $0xb0] sm:$0xf]
    %v76 = vld [vmem:[#allocation5 + $0xb4] sm:$0xff]
    %v77 = vld [vmem:[#allocation5 + $0xbc] sm:$0xf]
    %v78 = vld [vmem:[%s2] sm:$0x7]
    %v80 = vlaneseq
    %v81 = vshrl.u32 %v80, 7
    %v82 = vsub.s32 0, %v81
    %v83 = vrot.slane %v78, %v82
    %v84 = vlaneseq
    %v85 = vshrl.u32 %v84, 7
    %v86 = vsub.s32 1, %v85
    %v87 = vrot.slane %v78, %v86
    %v88 = vlaneseq
    %v89 = vshrl.u32 %v88, 7
    %v90 = vsub.s32 2, %v89
    %v91 = vrot.slane %v78, %v90
    %v97 = vunpack.c.l.b16 %v44
    %v98 = vunpack.c.l.b16 %v45
    %v99 = vpack.c.b16 %v98, %v97
    %v133 = vunpack.c.l.b16 %v46
    %v134 = vunpack.c.h.b16 %v46
    %v135 = vunpack.c.l.b16 %v47
    %v136 = vunpack.c.l.b16 %v48
    %v137 = vunpack.c.h.b16 %v48
    %v138 = vunpack.c.l.b16 %v49
    %v139 = vunpack.c.l.b16 %v50
    %v140 = vunpack.c.h.b16 %v50
    %v141 = vunpack.c.l.b16 %v51
    %v142 = vunpack.c.l.b16 %v52
    %v143 = vunpack.c.h.b16 %v52
    %v144 = vunpack.c.l.b16 %v53
    %v145 = vunpack.c.l.b16 %v54
    %v146 = vunpack.c.h.b16 %v54
    %v147 = vunpack.c.l.b16 %v55
    %v148 = vunpack.c.l.b16 %v56
    %v149 = vunpack.c.h.b16 %v56
    %v150 = vunpack.c.l.b16 %v57
    %v151 = vunpack.c.l.b16 %v58
    %v152 = vunpack.c.h.b16 %v58
    %v153 = vunpack.c.l.b16 %v59
    %v154 = vunpack.c.l.b16 %v60
    %v155 = vunpack.c.h.b16 %v60
    %v156 = vunpack.c.l.b16 %v61
    %v157 = vunpack.c.l.b16 %v62
    %v158 = vunpack.c.h.b16 %v62
    %v159 = vunpack.c.l.b16 %v63
    %v160 = vunpack.c.l.b16 %v64
    %v161 = vunpack.c.h.b16 %v64
    %v162 = vunpack.c.l.b16 %v65
    %v163 = vunpack.c.l.b16 %v66
    %v164 = vunpack.c.h.b16 %v66
    %v165 = vunpack.c.l.b16 %v67
    %v166 = vunpack.c.l.b16 %v68
    %v167 = vunpack.c.h.b16 %v68
    %v168 = vunpack.c.l.b16 %v69
    %v169 = vunpack.c.l.b16 %v70
    %v170 = vunpack.c.h.b16 %v70
    %v171 = vunpack.c.l.b16 %v71
    %v172 = vunpack.c.l.b16 %v72
    %v173 = vunpack.c.h.b16 %v72
    %v174 = vunpack.c.l.b16 %v73
    %v175 = vunpack.c.l.b16 %v74
    %v176 = vunpack.c.h.b16 %v74
    %v177 = vunpack.c.l.b16 %v75
    %v178 = vunpack.c.l.b16 %v76
    %v179 = vunpack.c.h.b16 %v76
    %v180 = vunpack.c.l.b16 %v77
    %v181 = vpack.c.b16 %v136, %v133
    %v182 = vpack.c.b16 %v137, %v134
    %v183 = vpack.c.b16 %v138, %v135
    %v184 = vpack.c.b16 %v142, %v139
    %v185 = vpack.c.b16 %v143, %v140
    %v186 = vpack.c.b16 %v144, %v141
    %v187 = vpack.c.b16 %v148, %v145
    %v188 = vpack.c.b16 %v149, %v146
    %v189 = vpack.c.b16 %v150, %v147
    %v190 = vpack.c.b16 %v154, %v151
    %v191 = vpack.c.b16 %v155, %v152
    %v192 = vpack.c.b16 %v156, %v153
    %v193 = vpack.c.b16 %v160, %v157
    %v194 = vpack.c.b16 %v161, %v158
    %v195 = vpack.c.b16 %v162, %v159
    %v196 = vpack.c.b16 %v166, %v163
    %v197 = vpack.c.b16 %v167, %v164
    %v198 = vpack.c.b16 %v168, %v165
    %v199 = vpack.c.b16 %v172, %v169
    %v200 = vpack.c.b16 %v173, %v170
    %v201 = vpack.c.b16 %v174, %v171
    %v202 = vpack.c.b16 %v178, %v175
    %v203 = vpack.c.b16 %v179, %v176
    %v204 = vpack.c.b16 %v180, %v177
    %229 = vmatprep.subr.bf16.mxu0 %v182
    %230 = vmatpush1.bf16.msra.mxu0 %v181
    %231 = vmatprep.subr.bf16.mxu0 %v185
    %232 = vmatpush1.bf16.msra.mxu0 %v184
    %233 = vmatprep.subr.bf16.mxu0 %v188
    %234 = vmatpush1.bf16.msra.mxu0 %v187
    %235 = vmatprep.subr.bf16.mxu0 %v191
    %236 = vmatpush1.bf16.msra.mxu0 %v190
    %237 = vmatprep.subr.bf16.mxu0 %v194
    %238 = vmatpush1.bf16.msra.mxu0 %v193
    %239 = vmatprep.subr.bf16.mxu0 %v197
    %240 = vmatpush1.bf16.msra.mxu0 %v196
    %241 = vmatprep.subr.bf16.mxu0 %v200
    %242 = vmatpush1.bf16.msra.mxu0 %v199
    %243 = vmatprep.subr.bf16.mxu0 %v203
    %244 = vmatpush1.bf16.msra.mxu0 %v202
    %245 = vmatprep.subr.bf16.mxu0 0
    %246 = vmatpush1.bf16.msra.mxu0 0
    %247 = vmatprep.subr.bf16.mxu0 0
    %248 = vmatpush1.bf16.msra.mxu0 0
    %249 = vmatprep.subr.bf16.mxu0 0
    %250 = vmatpush1.bf16.msra.mxu0 0
    %251 = vmatprep.subr.bf16.mxu0 0
    %252 = vmatpush1.bf16.msra.mxu0 0
    %253 = vmatprep.subr.bf16.mxu0 0
    %254 = vmatpush1.bf16.msra.mxu0 0
    %255 = vmatprep.subr.bf16.mxu0 0
    %256 = vmatpush1.bf16.msra.mxu0 0
    %257 = vmatprep.subr.bf16.mxu0 0
    %258 = vmatpush1.bf16.msra.mxu0 0
    %259 = vmatprep.subr.bf16.mxu0 0
    %260 = vmatpush1.bf16.msra.mxu0 0
    %261 = vmatprep.mubr.bf16.mxu0 0
    %262 = vmatmul.mubr.bf16.gmra.mrb[0].mxu0 %v99
    %v263 = vpop.f32.mrb[0].mxu0
    %v264 = vadd.f32 %v83, %v263
    %v265 = vpop.f32.mrb[0].mxu0
    %v266 = vadd.f32 %v87, %v265
    %v267 = vpop.f32.mrb[0].mxu0
    %v268 = vadd.f32 %v83, %v267
    %v269 = vpop.f32.mrb[0].mxu0
    %v270 = vadd.f32 %v87, %v269
    %271 = vdwg.mxu0
    %272 = vmatprep.subr.bf16.mxu0 0
    %273 = vmatpush1.bf16.msra.mxu0 %v183
    %274 = vmatprep.subr.bf16.mxu0 0
    %275 = vmatpush1.bf16.msra.mxu0 %v186
    %276 = vmatprep.subr.bf16.mxu0 0
    %277 = vmatpush1.bf16.msra.mxu0 %v189
    %278 = vmatprep.subr.bf16.mxu0 0
    %279 = vmatpush1.bf16.msra.mxu0 %v192
    %280 = vmatprep.subr.bf16.mxu0 0
    %281 = vmatpush1.bf16.msra.mxu0 %v195
    %282 = vmatprep.subr.bf16.mxu0 0
    %283 = vmatpush1.bf16.msra.mxu0 %v198
    %284 = vmatprep.subr.bf16.mxu0 0
    %285 = vmatpush1.bf16.msra.mxu0 %v201
    %286 = vmatprep.subr.bf16.mxu0 0
    %287 = vmatpush1.bf16.msra.mxu0 %v204
    %288 = vmatprep.subr.bf16.mxu0 0
    %289 = vmatpush1.bf16.msra.mxu0 0
    %290 = vmatprep.subr.bf16.mxu0 0
    %291 = vmatpush1.bf16.msra.mxu0 0
    %292 = vmatprep.subr.bf16.mxu0 0
    %293 = vmatpush1.bf16.msra.mxu0 0
    %294 = vmatprep.subr.bf16.mxu0 0
    %295 = vmatpush1.bf16.msra.mxu0 0
    %296 = vmatprep.subr.bf16.mxu0 0
    %297 = vmatpush1.bf16.msra.mxu0 0
    %298 = vmatprep.subr.bf16.mxu0 0
    %299 = vmatpush1.bf16.msra.mxu0 0
    %300 = vmatprep.subr.bf16.mxu0 0
    %301 = vmatpush1.bf16.msra.mxu0 0
    %302 = vmatprep.subr.bf16.mxu0 0
    %303 = vmatpush1.bf16.msra.mxu0 0
    %304 = vmatprep.mubr.bf16.mxu0 0
    %305 = vmatmul.mubr.bf16.gmra.mrb[0].mxu0 %v99
    %v306 = vpop.f32.mrb[0].mxu0
    %v307 = vadd.f32 %v91, %v306
    %v308 = vpop.f32.mrb[0].mxu0
    %v309 = vpop.f32.mrb[0].mxu0
    %v310 = vadd.f32 %v91, %v309
    %v311 = vpop.f32.mrb[0].mxu0
    %312 = vdwg.mxu0
    %313 = vst [vmem:[#allocation7] sm:$0xff] %v264
    %314 = vst [vmem:[#allocation7 + $0x8] sm:$0xff] %v266
    %315 = vst [vmem:[#allocation7 + $0x10] sm:$0xff] %v307
    %316 = vst [vmem:[#allocation7 + $0x18] sm:$0xff] %v268
    %317 = vst [vmem:[#allocation7 + $0x20] sm:$0xff] %v270
    %318 = vst [vmem:[#allocation7 + $0x28] sm:$0xff] %v310
    // Predicated region
    $region22: #{tpu_custom_call.1} parent=1 // pred_check
      _
    $region23: #{tpu_custom_call.1} parent=1 // pred_check_branch
      %320 = sbr.rel (0) target = $region25
    $region24: #{tpu_custom_call.1} parent=1 // pred_region
      %s322 = ssub.s32 768, 768
      %323 = vsyncadd [#allocation4], %s322
      %s324 = sshll.u32 [#allocation7], 4
      %s325 = int_to_ptr.vmem [resolvable:$true] %s324
      %330 = dma.vmem_to_hbm [thread:$0]  %s325, 768, %s3, [#allocation4], 384, 384, 24
    $region25: #{tpu_custom_call.1} parent=1 // pred_fallthru
      _
    // Predicated region
    $region26: #{tpu_custom_call.1} parent=1 // pred_check
      _
    $region27: #{tpu_custom_call.1} parent=1 // pred_check_branch
      %332 = sbr.rel (0) target = $region29
    $region28: #{tpu_custom_call.1} parent=1 // pred_region
      %333 = dma.done [#allocation4], 768
    $region29: #{tpu_custom_call.1} parent=1 // pred_fallthru
      _
    %334 = vsyncpa [#allocation3], 1
    %335 = vsyncpa [#allocation6], 1
    %336 = vsyncpa [#allocation4], 1

</llo_original>
